<compile_context>
chip_gen: v6e
topology: v6e:2x2x1
jax: 0.10.0
libtpu: 0.0.40
codegen_flags: <defaults>
</compile_context>

<pallas_src>
import functools
import math

import jax
import jax.numpy as jnp
from jax import lax
from jax.experimental import pallas as pl
from jax.experimental.pallas import tpu as pltpu

_VMEM_LIMIT_BYTES = 48 * 1024 * 1024  # portable default (fits v5e/v6e/v7x)


# ---------------------------------------------------------------------------
# Kernel A: fused QKV projection, split into separate q / k / v outputs.
# ---------------------------------------------------------------------------
def _qkv_proj_kernel(x_ref, w_ref, b_ref, q_ref, k_ref, v_ref, *, n_embd, q_scale):
    # x_ref: (block_m, C); w_ref: (C, 3C) bf16; b_ref: (1, 3C) f32.
    x = x_ref[...].astype(w_ref.dtype)                        # bf16 MXU inputs
    acc = jnp.dot(x, w_ref[...], preferred_element_type=jnp.float32) + b_ref[...]
    C = n_embd
    q_ref[...] = (acc[:, 0 * C:1 * C] * q_scale).astype(q_ref.dtype)
    k_ref[...] = acc[:, 1 * C:2 * C].astype(k_ref.dtype)
    v_ref[...] = acc[:, 2 * C:3 * C].astype(v_ref.dtype)


# ---------------------------------------------------------------------------
# Kernel B: flash attention over lower-triangular tile pairs + output proj.
# grid = (B, P); P indexes the prefetched (qi, ki) pair arrays.
# ---------------------------------------------------------------------------
def _flash_attn_proj_kernel(qi_ref, ki_ref,                     # scalar prefetch
                            q_ref, k_ref, v_ref, wp_ref, bp_ref,  # inputs
                            o_ref,                               # output
                            m_ref, l_ref, acc_ref,               # scratch
                            *, n_head, d_head, block_q, block_k):
    p = pl.program_id(1)
    qi = qi_ref[p]
    ki = ki_ref[p]
    # Last kv tile needed for this q tile under the causal mask.
    last_ki = ((qi + 1) * block_q - 1) // block_k

    # Fresh per-head online-softmax state at the start of each q tile's sweep.
    @pl.when(ki == 0)
    def _init():
        m_ref[...] = jnp.full_like(m_ref, -jnp.inf)
        l_ref[...] = jnp.zeros_like(l_ref)
        acc_ref[...] = jnp.zeros_like(acc_ref)

    # Causal mask as an additive bias, built once per grid step (shared by all
    # heads); nonzero only on tiles that straddle the diagonal.  Global indices
    # keep this correct when block_q != block_k.
    row = qi * block_q + lax.broadcasted_iota(jnp.int32, (block_q, block_k), 0)
    col = ki * block_k + lax.broadcasted_iota(jnp.int32, (block_q, block_k), 1)
    mask_bias = jnp.where(col > row, jnp.float32(-1e30), jnp.float32(0.0))

    q_all = q_ref[0]     # (block_q, C) bf16 (q pre-scaled by 1/sqrt(D))
    k_all = k_ref[0]     # (block_k, C) bf16
    v_all = v_ref[0]     # (block_k, C) bf16

    for h in range(n_head):                       # static unroll over heads
        cs = slice(h * d_head, (h + 1) * d_head)  # static lane slice
        qh, kh, vh = q_all[:, cs], k_all[:, cs], v_all[:, cs]

        # q @ k^T on the MXU without materializing a transpose.
        s = lax.dot_general(qh, kh, (((1,), (1,)), ((), ())),
                            preferred_element_type=jnp.float32)  # (bq, bk) f32
        s = s + mask_bias

        m_prev = m_ref[h]                                        # (bq, 1) f32
        m_new = jnp.maximum(m_prev, jnp.max(s, axis=-1, keepdims=True))
        alpha = jnp.exp(m_prev - m_new)
        pr = jnp.exp(s - m_new)                                  # (bq, bk) f32
        l_ref[h] = alpha * l_ref[h] + jnp.sum(pr, axis=-1, keepdims=True)
        acc_ref[h] = alpha * acc_ref[h] + jnp.dot(
            pr.astype(vh.dtype), vh, preferred_element_type=jnp.float32)
        m_ref[h] = m_new

    # Final kv tile for this q tile: normalize every head, assemble a
    # lane-dense (block_q, C) activation and do ONE full-K output projection.
    @pl.when(ki == last_ki)
    def _finalize():
        atts = []
        for h in range(n_head):
            inv_l = pl.reciprocal(l_ref[h], approx=True)
            atts.append((acc_ref[h] * inv_l).astype(wp_ref.dtype))
        att = jnp.concatenate(atts, axis=-1)                    # (bq, C) bf16
        y = jnp.dot(att, wp_ref[...], preferred_element_type=jnp.float32)
        o_ref[0] = (y + bp_ref[...]).astype(o_ref.dtype)


# ---------------------------------------------------------------------------
# Wrapper
# ---------------------------------------------------------------------------
def causal_self_attention(x, w_qkv, b_qkv, w_proj, b_proj, *, n_head,
                          block_q=256, block_k=256, block_m=256,
                          compute_dtype=jnp.bfloat16,
                          vmem_limit_bytes=_VMEM_LIMIT_BYTES):
    """x: (B, T, C). w_qkv: (C, 3C), b_qkv: (3C,), w_proj: (C, C), b_proj: (C,).
    Weights are the PyTorch Linear weights pre-transposed to (in, out)."""
    B, T, C = x.shape
    assert C % n_head == 0
    D = C // n_head
    H = n_head
    out_dtype = x.dtype

    block_q = min(block_q, T)
    block_k = min(block_k, T)
    assert T % block_q == 0 and T % block_k == 0, "T must divide the q/kv tiles"
    M = B * T
    block_m = min(block_m, M)
    assert M % block_m == 0

    # Weights in bf16 (halves weight DMA/VMEM); biases stay f32.
    wq = w_qkv.astype(compute_dtype)
    wp = w_proj.astype(compute_dtype)
    bq = b_qkv.reshape(1, 3 * C).astype(jnp.float32)
    bp = b_proj.reshape(1, C).astype(jnp.float32)

    # --- Kernel A: QKV projection, emitting q / k / v separately -----------
    x2 = x.reshape(M, C)
    qkv_kernel = functools.partial(_qkv_proj_kernel, n_embd=C,
                                   q_scale=1.0 / math.sqrt(D))
    q2, k2, v2 = pl.pallas_call(
        qkv_kernel,
        out_shape=[jax.ShapeDtypeStruct((M, C), compute_dtype) for _ in range(3)],
        grid=(M // block_m,),
        in_specs=[
            pl.BlockSpec((block_m, C), lambda i: (i, 0)),
            pl.BlockSpec((C, 3 * C), lambda i: (0, 0)),   # weight resident
            pl.BlockSpec((1, 3 * C), lambda i: (0, 0)),
        ],
        out_specs=[pl.BlockSpec((block_m, C), lambda i: (i, 0)) for _ in range(3)],
        compiler_params=pltpu.CompilerParams(
            dimension_semantics=("parallel",),
            vmem_limit_bytes=vmem_limit_bytes),
    )(x2, wq, bq)

    # Free metadata reshapes only — no XLA transpose / extra HBM round trip.
    q = q2.reshape(B, T, C)
    k = k2.reshape(B, T, C)
    v = v2.reshape(B, T, C)

    # --- Kernel B: triangular flash attention + output projection ----------
    nq = T // block_q
    qi_list, ki_list = [], []
    for qi in range(nq):
        last = ((qi + 1) * block_q - 1) // block_k
        for ki in range(last + 1):
            qi_list.append(qi)
            ki_list.append(ki)
    qi_map = jnp.asarray(qi_list, dtype=jnp.int32)
    ki_map = jnp.asarray(ki_list, dtype=jnp.int32)
    num_pairs = len(qi_list)

    flash = functools.partial(_flash_attn_proj_kernel, n_head=H, d_head=D,
                              block_q=block_q, block_k=block_k)
    grid_spec = pltpu.PrefetchScalarGridSpec(
        num_scalar_prefetch=2,
        grid=(B, num_pairs),
        in_specs=[
            # q tile: constant across this q tile's kv sweep -> no re-DMA.
            pl.BlockSpec((1, block_q, C), lambda b, p, qi_m, ki_m: (b, qi_m[p], 0)),
            pl.BlockSpec((1, block_k, C), lambda b, p, qi_m, ki_m: (b, ki_m[p], 0)),
            pl.BlockSpec((1, block_k, C), lambda b, p, qi_m, ki_m: (b, ki_m[p], 0)),
            # Full output-projection weight, resident (constant index map).
            pl.BlockSpec((C, C), lambda b, p, qi_m, ki_m: (0, 0)),
            pl.BlockSpec((1, C), lambda b, p, qi_m, ki_m: (0, 0)),
        ],
        # Lane-dense (block_q, C) output block, revisited across the kv sweep,
        # fully written at the final kv tile of each q tile.
        out_specs=pl.BlockSpec((1, block_q, C),
                               lambda b, p, qi_m, ki_m: (b, qi_m[p], 0)),
        scratch_shapes=[
            pltpu.VMEM((H, block_q, 1), jnp.float32),   # running max m (per head)
            pltpu.VMEM((H, block_q, 1), jnp.float32),   # running sum l (per head)
            pltpu.VMEM((H, block_q, D), jnp.float32),   # attention acc (per head)
        ],
    )
    out = pl.pallas_call(
        flash,
        out_shape=jax.ShapeDtypeStruct((B, T, C), out_dtype),
        grid_spec=grid_spec,
        # B is megacore-parallel (v7x: keep B >= 2 / even for balanced cores);
        # the triangular pair axis is a sequential reduction sweep.
        compiler_params=pltpu.CompilerParams(
            dimension_semantics=("parallel", "arbitrary"),
            vmem_limit_bytes=vmem_limit_bytes),
    )(qi_map, ki_map, q, k, v, wp, bp)
    return out


# ---------------------------------------------------------------------------
# Pure-JAX reference (f32) for correctness checking.
# ---------------------------------------------------------------------------
def _reference(x, w_qkv, b_qkv, w_proj, b_proj, n_head):
    B, T, C = x.shape
    D = C // n_head
    qkv = x @ w_qkv + b_qkv
    q, k, v = jnp.split(qkv, 3, axis=-1)
    q = q.reshape(B, T, n_head, D).transpose(0, 2, 1, 3)
    k = k.reshape(B, T, n_head, D).transpose(0, 2, 1, 3)
    v = v.reshape(B, T, n_head, D).transpose(0, 2, 1, 3)
    s = jnp.einsum('bhtd,bhsd->bhts', q, k) / math.sqrt(D)
    mask = jnp.tril(jnp.ones((T, T), dtype=bool))
    s = jnp.where(mask[None, None], s, -jnp.inf)
    p = jax.nn.softmax(s, axis=-1)
    y = jnp.einsum('bhts,bhsd->bhtd', p, v)
    y = y.transpose(0, 2, 1, 3).reshape(B, T, C)
    return y @ w_proj + b_proj


if __name__ == "__main__":
    # Small GPT-2-like config.  block_q=64 / block_k=32 gives multiple q and kv
    # tiles, exercising the triangular pair enumeration, decoupled tile sizes,
    # diagonal masking and the per-head online-softmax state.
    B, T, C, n_head = 2, 128, 128, 4

    key = jax.random.PRNGKey(0)
    kx, k1, k2, k3, k4 = jax.random.split(key, 5)

    x = jax.random.normal(kx, (B, T, C), dtype=jnp.float32)
    # nn.Linear(C, 3C): weight (3C, C), bias (3C,) -> pass transposed (C, 3C).
    w_qkv = (jax.random.normal(k1, (3 * C, C), dtype=jnp.float32) * 0.02).T
    b_qkv = jax.random.normal(k2, (3 * C,), dtype=jnp.float32) * 0.02
    # nn.Linear(C, C): weight (C, C), bias (C,) -> pass transposed.
    w_proj = (jax.random.normal(k3, (C, C), dtype=jnp.float32) * 0.02).T
    b_proj = jax.random.normal(k4, (C,), dtype=jnp.float32) * 0.02

    out = causal_self_attention(x, w_qkv, b_qkv, w_proj, b_proj,
                                n_head=n_head,
                                block_q=64, block_k=32, block_m=128)
    out = jax.block_until_ready(out)

    ref = _reference(x, w_qkv, b_qkv, w_proj, b_proj, n_head)
    assert out.shape == (B, T, C)
    # bf16 MXU inputs / bf16 q,k,v intermediates + approximate reciprocal ->
    # relaxed tolerance vs the f32 reference.
    max_err = float(jnp.max(jnp.abs(out - ref)))
    assert max_err < 2e-2, f"mismatch vs reference, max abs err = {max_err}"

    print("KERNEL_OK")
</pallas_src>

<mosaic_0001>
module attributes {stable_mosaic.version = 11 : i64} {
  func.func @_qkv_proj_kernel(%arg0: i32, %arg1: memref<128x128xf32, #tpu.memory_space<vmem>>, %arg2: memref<128x384xbf16, #tpu.memory_space<vmem>>, %arg3: memref<1x384xf32, #tpu.memory_space<vmem>>, %arg4: memref<128x128xbf16, #tpu.memory_space<vmem>>, %arg5: memref<128x128xbf16, #tpu.memory_space<vmem>>, %arg6: memref<128x128xbf16, #tpu.memory_space<vmem>>) attributes {dimension_semantics = [#tpu.dimension_semantics<parallel>], iteration_bounds = array<i64: 2>, scalar_prefetch = 0 : i64, scratch_operands = 0 : i64, tpu.core_type = #tpu.core_type<tc>, window_params = [{transform_indices = @transform_0, window_bounds = array<i64: 128, 128>}, {pipeline_mode = #tpu.pipeline_mode<synchronous>, transform_indices = @transform_1, window_bounds = array<i64: 128, 384>}, {pipeline_mode = #tpu.pipeline_mode<synchronous>, transform_indices = @transform_2, window_bounds = array<i64: 1, 384>}, {transform_indices = @transform_3, window_bounds = array<i64: 128, 128>}, {transform_indices = @transform_4, window_bounds = array<i64: 128, 128>}, {transform_indices = @transform_5, window_bounds = array<i64: 128, 128>}]} {
    %c0 = arith.constant 0 : index
    %c0_0 = arith.constant 0 : index
    %0 = vector.load %arg1[%c0, %c0_0] : memref<128x128xf32, #tpu.memory_space<vmem>>, vector<128x128xf32>
    %1 = arith.truncf %0 : vector<128x128xf32> to vector<128x128xbf16>
    %c0_1 = arith.constant 0 : index
    %c0_2 = arith.constant 0 : index
    %2 = vector.load %arg2[%c0_1, %c0_2] : memref<128x384xbf16, #tpu.memory_space<vmem>>, vector<128x384xbf16>
    %cst = arith.constant dense<0.000000e+00> : vector<128x384xf32>
    %3 = tpu.matmul %1, %2, %cst {dimension_numbers = #tpu.dot_dimension_numbers<[1], [0], [0], [1], [0, 0, 1, 1], [], []>} : vector<128x128xbf16>, vector<128x384xbf16>, vector<128x384xf32> -> vector<128x384xf32>
    %c0_3 = arith.constant 0 : index
    %c0_4 = arith.constant 0 : index
    %4 = vector.load %arg3[%c0_3, %c0_4] : memref<1x384xf32, #tpu.memory_space<vmem>>, vector<1x384xf32>
    %5 = vector.broadcast %4 : vector<1x384xf32> to vector<128x384xf32>
    %6 = arith.addf %3, %5 : vector<128x384xf32>
    %7 = vector.extract_strided_slice %6 {offsets = [0, 0], sizes = [128, 128], strides = [1, 1]} : vector<128x384xf32> to vector<128x128xf32>
    %cst_5 = arith.constant 0.176776692 : f32
    %8 = vector.broadcast %cst_5 : f32 to vector<128x128xf32>
    %9 = arith.mulf %7, %8 : vector<128x128xf32>
    %10 = arith.truncf %9 : vector<128x128xf32> to vector<128x128xbf16>
    %c0_6 = arith.constant 0 : index
    %c0_7 = arith.constant 0 : index
    %11 = vector.load %arg4[%c0_6, %c0_7] : memref<128x128xbf16, #tpu.memory_space<vmem>>, vector<128x128xbf16>
    tpu.vector_store %arg4[%c0_6, %c0_7], %10 {strides = array<i32>} : memref<128x128xbf16, #tpu.memory_space<vmem>>, vector<128x128xbf16>,
    %12 = vector.extract_strided_slice %6 {offsets = [0, 128], sizes = [128, 128], strides = [1, 1]} : vector<128x384xf32> to vector<128x128xf32>
    %13 = arith.truncf %12 : vector<128x128xf32> to vector<128x128xbf16>
    %c0_8 = arith.constant 0 : index
    %c0_9 = arith.constant 0 : index
    %14 = vector.load %arg5[%c0_8, %c0_9] : memref<128x128xbf16, #tpu.memory_space<vmem>>, vector<128x128xbf16>
    tpu.vector_store %arg5[%c0_8, %c0_9], %13 {strides = array<i32>} : memref<128x128xbf16, #tpu.memory_space<vmem>>, vector<128x128xbf16>,
    %15 = vector.extract_strided_slice %6 {offsets = [0, 256], sizes = [128, 128], strides = [1, 1]} : vector<128x384xf32> to vector<128x128xf32>
    %16 = arith.truncf %15 : vector<128x128xf32> to vector<128x128xbf16>
    %c0_10 = arith.constant 0 : index
    %c0_11 = arith.constant 0 : index
    %17 = vector.load %arg6[%c0_10, %c0_11] : memref<128x128xbf16, #tpu.memory_space<vmem>>, vector<128x128xbf16>
    tpu.vector_store %arg6[%c0_10, %c0_11], %16 {strides = array<i32>} : memref<128x128xbf16, #tpu.memory_space<vmem>>, vector<128x128xbf16>,
    return
  }
  func.func @transform_0(%arg0: i32) -> (i32, i32) {
    %c0_i32 = arith.constant 0 : i32
    %c0_i32_0 = arith.constant 0 : i32
    return %arg0, %c0_i32 : i32, i32
  }
  func.func @transform_1(%arg0: i32) -> (i32, i32) {
    %c0_i32 = arith.constant 0 : i32
    %c0_i32_0 = arith.constant 0 : i32
    %c0_i32_1 = arith.constant 0 : i32
    return %c0_i32, %c0_i32_0 : i32, i32
  }
  func.func @transform_2(%arg0: i32) -> (i32, i32) {
    %c0_i32 = arith.constant 0 : i32
    %c0_i32_0 = arith.constant 0 : i32
    %c0_i32_1 = arith.constant 0 : i32
    return %c0_i32, %c0_i32_0 : i32, i32
  }
  func.func @transform_3(%arg0: i32) -> (i32, i32) {
    %c0_i32 = arith.constant 0 : i32
    %c0_i32_0 = arith.constant 0 : i32
    return %arg0, %c0_i32 : i32, i32
  }
  func.func @transform_4(%arg0: i32) -> (i32, i32) {
    %c0_i32 = arith.constant 0 : i32
    %c0_i32_0 = arith.constant 0 : i32
    return %arg0, %c0_i32 : i32, i32
  }
  func.func @transform_5(%arg0: i32) -> (i32, i32) {
    %c0_i32 = arith.constant 0 : i32
    %c0_i32_0 = arith.constant 0 : i32
    return %arg0, %c0_i32 : i32, i32
  }
}

</mosaic_0001>

<llo_original>
// kernel: tpu_custom_call.1
$region0: #{tpu_custom_call.1}
  #allocation0 [shape = 'u32[]', space=smem, size = 0x4, offset = 0x4, fixed_abs, tag = 'smem constant byte address 0x4 - core index']
  #allocation1 [shape = 'u32[144,128]{1,0:T(1,128)}', space=vmem, size = 0x12000, scoped, tag = 'internal scratch']
  %s0 = inlined_call_operand.hbm [shape: f32[256,128], index: 0, kind: input, shape index: {}]
  %s1 = inlined_call_operand.hbm [shape: bf16[128,384], index: 1, kind: input, shape index: {}]
  %s2 = inlined_call_operand.vmem [shape: f32[1,384], index: 2, kind: input, shape index: {}]
  %s3 = inlined_call_operand.hbm [shape: bf16[256,128], index: 3, kind: output, shape index: {0}]
  %s4 = inlined_call_operand.hbm [shape: bf16[256,128], index: 4, kind: output, shape index: {1}]
  %s5 = inlined_call_operand.hbm [shape: bf16[256,128], index: 5, kind: output, shape index: {2}]
  %6 = xla_tuple %s3, %s4, %s5
  %s7 = sld [smem:[#allocation0]]
  $region69: #{tpu_custom_call.1} parent=0
    _
  %s9 = ssub.s32 1, %s7
  %s10 = scalar_select 0, %s9, %s7
  $region1: #{tpu_custom_call.1} parent=0
    #allocation2 [shape = 'u8[131072]{0}', space=vmem, size = 0x20000, scoped, tag = 'input window, operand 0']
    #allocation3 [shape = 's32[2]{0}', space=sflag, size = 0x8, scoped, tag = 'scoped memory for tpu_custom_call.1']
    #allocation4 [shape = 's32[2]{0}', space=sflag, size = 0x8, scoped, tag = 'scoped memory for tpu_custom_call.1']
    #allocation5 [shape = 'u8[98304]{0}', space=vmem, size = 0x18000, scoped, tag = 'input window, operand 1, single buffered']
    #allocation6 [shape = 's32[1]{0}', space=sflag, size = 0x4, scoped, tag = 'scoped memory for tpu_custom_call.1']
    #allocation7 [shape = 'u8[65536]{0}', space=vmem, size = 0x10000, scoped, tag = 'output window, operand 0']
    #allocation8 [shape = 'u8[65536]{0}', space=vmem, size = 0x10000, scoped, tag = 'output window, operand 1']
    #allocation9 [shape = 's32[2]{0}', space=sflag, size = 0x8, scoped, tag = 'scoped memory for tpu_custom_call.1']
    #allocation10 [shape = 'u8[65536]{0}', space=vmem, size = 0x10000, scoped, tag = 'output window, operand 2']
    %11 = vsyncpa [#allocation3], 0
    %s12 = scalar_lea.sflag [#allocation3], 1
    %13 = vsyncpa %s12, 0
    %14 = vsyncpa [#allocation6], 0
    %15 = vsyncpa [#allocation4], 0
    %s16 = scalar_lea.sflag [#allocation4], 1
    %17 = vsyncpa %s16, 0
    %18 = vsyncpa [#allocation9], 0
    %s19 = scalar_lea.sflag [#allocation9], 1
    %20 = vsyncpa %s19, 0
    loop: start=0, step=1, limit=4
    $region2: #{tpu_custom_call.1} parent=1 // loop_pre_header
      _
    $region3: #{tpu_custom_call.1} parent=1 // loop_header
      %s22 = sphi 0, %s26
      %p23 = scmp.ge.s32.totalorder %s22, 4
      %s32 = sphi 0, %s34
      %s35 = sphi 0, %s32
      %s36 = sphi 0, %s35
      %s52 = sphi 0, %s36
      %s56 = sphi 0, %s56
      %s58 = sphi 0, %s56
      %s59 = sphi 0, %s58
      %s73 = sphi 0, %s59
      %s77 = sphi 0, %s77
      %s79 = sphi 0, %s77
      %s80 = sphi 0, %s79
      %s94 = sphi 0, %s80
      %s100 = sphi 0, %s102
      %s103 = sphi 0, %s100
      %s104 = sphi 0, %s103
      %s120 = sphi 0, %s104
      %s126 = sphi 0, %s128
      %s129 = sphi 0, %s126
      %s130 = sphi 0, %s129
      %s146 = sphi 0, %s130
      %s152 = sphi 0, %s154
      %s155 = sphi 0, %s152
      %s156 = sphi 0, %s155
      %s172 = sphi 0, %s156
    $region4: #{tpu_custom_call.1} parent=1 // loop_header_branch
      %25 = sbr.rel (%p23) target = $region8
    $region5: #{tpu_custom_call.1} parent=1 // loop_body
      %s27 = ssub.s32 %s22, 1
      %s28 = ssub.s32 %s22, 2
      %s29 = sadd.s32 %s22, 1
      %s30 = ssub.s32 %s22, %s29
      %p31 = scmp.eq.s32.totalorder %s30, 0
      %s33 = sadd.s32 %s32, 1
      %s34 = scalar_select %p31, %s32, %s33
      %p37 = pneg %p31
      %p38 = scmp.eq.s32.totalorder %s22, 1
      %p39 = por %p37, %p38
      %p40 = scmp.ne.s32.totalorder %s32, %s35
      %p41 = scmp.eq.s32.totalorder %s22, 0
      %p42 = por %p40, %p41
      %p43 = scmp.ne.s32.totalorder %s32, %s35
      %p44 = scmp.eq.s32.totalorder %s27, 1
      %p45 = por %p43, %p44
      %p46 = scmp.ne.s32.totalorder %s35, %s36
      %p47 = scmp.eq.s32.totalorder %s27, 0
      %p48 = por %p46, %p47
      %p49 = scmp.ne.s32.totalorder %s35, %s36
      %p50 = scmp.eq.s32.totalorder %s28, 1
      %p51 = por %p49, %p50
      %p53 = scmp.ne.s32.totalorder %s36, %s52
      %p54 = scmp.eq.s32.totalorder %s28, 0
      %p55 = por %p53, %p54
      %s57 = sadd.s32 %s56, 1
      %p60 = scmp.eq.s32.totalorder %s22, 1
      %p61 = scmp.ne.s32.totalorder %s56, %s58
      %p62 = scmp.eq.s32.totalorder %s22, 0
      %p63 = por %p61, %p62
      %p64 = scmp.ne.s32.totalorder %s56, %s58
      %p65 = scmp.eq.s32.totalorder %s27, 1
      %p66 = por %p64, %p65
      %p67 = scmp.ne.s32.totalorder %s58, %s59
      %p68 = scmp.eq.s32.totalorder %s27, 0
      %p69 = por %p67, %p68
      %p70 = scmp.ne.s32.totalorder %s58, %s59
      %p71 = scmp.eq.s32.totalorder %s28, 1
      %p72 = por %p70, %p71
      %p74 = scmp.ne.s32.totalorder %s59, %s73
      %p75 = scmp.eq.s32.totalorder %s28, 0
      %p76 = por %p74, %p75
      %s78 = sadd.s32 %s77, 1
      %p81 = scmp.eq.s32.totalorder %s22, 1
      %p82 = scmp.ne.s32.totalorder %s77, %s79
      %p83 = scmp.eq.s32.totalorder %s22, 0
      %p84 = por %p82, %p83
      %p85 = scmp.ne.s32.totalorder %s77, %s79
      %p86 = scmp.eq.s32.totalorder %s27, 1
      %p87 = por %p85, %p86
      %p88 = scmp.ne.s32.totalorder %s79, %s80
      %p89 = scmp.eq.s32.totalorder %s27, 0
      %p90 = por %p88, %p89
      %p91 = scmp.ne.s32.totalorder %s79, %s80
      %p92 = scmp.eq.s32.totalorder %s28, 1
      %p93 = por %p91, %p92
      %p95 = scmp.ne.s32.totalorder %s80, %s94
      %p96 = scmp.eq.s32.totalorder %s28, 0
      %p97 = por %p95, %p96
      %s98 = ssub.s32 %s22, %s29
      %p99 = scmp.eq.s32.totalorder %s98, 0
      %s101 = sadd.s32 %s100, 1
      %s102 = scalar_select %p99, %s100, %s101
      %p105 = pneg %p99
      %p106 = scmp.eq.s32.totalorder %s22, 1
      %p107 = por %p105, %p106
      %p108 = scmp.ne.s32.totalorder %s100, %s103
      %p109 = scmp.eq.s32.totalorder %s22, 0
      %p110 = por %p108, %p109
      %p111 = scmp.ne.s32.totalorder %s100, %s103
      %p112 = scmp.eq.s32.totalorder %s27, 1
      %p113 = por %p111, %p112
      %p114 = scmp.ne.s32.totalorder %s103, %s104
      %p115 = scmp.eq.s32.totalorder %s27, 0
      %p116 = por %p114, %p115
      %p117 = scmp.ne.s32.totalorder %s103, %s104
      %p118 = scmp.eq.s32.totalorder %s28, 1
      %p119 = por %p117, %p118
      %p121 = scmp.ne.s32.totalorder %s104, %s120
      %p122 = scmp.eq.s32.totalorder %s28, 0
      %p123 = por %p121, %p122
      %s124 = ssub.s32 %s22, %s29
      %p125 = scmp.eq.s32.totalorder %s124, 0
      %s127 = sadd.s32 %s126, 1
      %s128 = scalar_select %p125, %s126, %s127
      %p131 = pneg %p125
      %p132 = scmp.eq.s32.totalorder %s22, 1
      %p133 = por %p131, %p132
      %p134 = scmp.ne.s32.totalorder %s126, %s129
      %p135 = scmp.eq.s32.totalorder %s22, 0
      %p136 = por %p134, %p135
      %p137 = scmp.ne.s32.totalorder %s126, %s129
      %p138 = scmp.eq.s32.totalorder %s27, 1
      %p139 = por %p137, %p138
      %p140 = scmp.ne.s32.totalorder %s129, %s130
      %p141 = scmp.eq.s32.totalorder %s27, 0
      %p142 = por %p140, %p141
      %p143 = scmp.ne.s32.totalorder %s129, %s130
      %p144 = scmp.eq.s32.totalorder %s28, 1
      %p145 = por %p143, %p144
      %p147 = scmp.ne.s32.totalorder %s130, %s146
      %p148 = scmp.eq.s32.totalorder %s28, 0
      %p149 = por %p147, %p148
      %s150 = ssub.s32 %s22, %s29
      %p151 = scmp.eq.s32.totalorder %s150, 0
      %s153 = sadd.s32 %s152, 1
      %s154 = scalar_select %p151, %s152, %s153
      %p157 = pneg %p151
      %p158 = scmp.eq.s32.totalorder %s22, 1
      %p159 = por %p157, %p158
      %p160 = scmp.ne.s32.totalorder %s152, %s155
      %p161 = scmp.eq.s32.totalorder %s22, 0
      %p162 = por %p160, %p161
      %p163 = scmp.ne.s32.totalorder %s152, %s155
      %p164 = scmp.eq.s32.totalorder %s27, 1
      %p165 = por %p163, %p164
      %p166 = scmp.ne.s32.totalorder %s155, %s156
      %p167 = scmp.eq.s32.totalorder %s27, 0
      %p168 = por %p166, %p167
      %p169 = scmp.ne.s32.totalorder %s155, %s156
      %p170 = scmp.eq.s32.totalorder %s28, 1
      %p171 = por %p169, %p170
      %p173 = scmp.ne.s32.totalorder %s156, %s172
      %p174 = scmp.eq.s32.totalorder %s28, 0
      %p175 = por %p173, %p174
      %p176 = scmp.le.s32.totalorder 1, %s22
      %p177 = scmp.lt.s32.totalorder %s22, 3
      %p178 = pnand %p176, %p177
      %p179 = pneg %p178
      // Predicated region
      $region9: #{tpu_custom_call.1} parent=5 // pred_check
        _
      $region10: #{tpu_custom_call.1} parent=5 // pred_check_branch
        %181 = sbr.rel (%p178) target = $region12
      $region11: #{tpu_custom_call.1} parent=5 // pred_region
        %s182 = ssub.s32 %s22, 1
        // Predicated region
        $region13: #{tpu_custom_call.1} parent=11 // pred_check
          %p183 = pneg %p69
        $region14: #{tpu_custom_call.1} parent=11 // pred_check_branch
          %185 = sbr.rel (%p183) target = $region16
        $region15: #{tpu_custom_call.1} parent=11 // pred_region
          %s187 = ssub.s32 3072, 3072
          %188 = vsyncadd [#allocation6], %s187
          %s189 = sshll.u32 [#allocation5], 4
          %s190 = int_to_ptr.vmem [resolvable:$true] %s189
          %195 = dma.hbm_to_vmem [thread:$0]  %s1, 3072, %s190, [#allocation6], 192, 192, 12
        $region16: #{tpu_custom_call.1} parent=11 // pred_fallthru
          _
        // Predicated region
        $region17: #{tpu_custom_call.1} parent=11 // pred_check
          %p196 = pneg %p90
        $region18: #{tpu_custom_call.1} parent=11 // pred_check_branch
          %198 = sbr.rel (%p196) target = $region20
        $region19: #{tpu_custom_call.1} parent=11 // pred_region
          _
        $region20: #{tpu_custom_call.1} parent=11 // pred_fallthru
          _
      $region12: #{tpu_custom_call.1} parent=5 // pred_fallthru
        _
      %p199 = scmp.lt.s32.totalorder %s22, 2
      // Predicated region
      $region21: #{tpu_custom_call.1} parent=5 // pred_check
        %p200 = pneg %p199
      $region22: #{tpu_custom_call.1} parent=5 // pred_check_branch
        %202 = sbr.rel (%p200) target = $region24
      $region23: #{tpu_custom_call.1} parent=5 // pred_region
        // Predicated region
        $region25: #{tpu_custom_call.1} parent=23 // pred_check
          %p203 = pneg %p42
        $region26: #{tpu_custom_call.1} parent=23 // pred_check_branch
          %205 = sbr.rel (%p203) target = $region28
        $region27: #{tpu_custom_call.1} parent=23 // pred_region
          %s206 = sand.u32 %s32, 1
          %s207 = scalar_lea.sflag [#allocation3], %s206
          %s208 = sand.u32 %s32, 1
          %s209 = smul.addr %s208, 128
          %s210 = scalar_lea.vmem [#allocation2], %s209
          %s211 = smul.u32 16, %s22
          %s213 = ssub.s32 2048, 2048
          %214 = vsyncadd %s207, %s213
          %s215 = smul.addr %s211, 128
          %s216 = scalar_lea.hbm %s0, %s215
          %s217 = sshll.u32 %s210, 4
          %s218 = int_to_ptr.vmem [resolvable:$true] %s217
          %223 = dma.hbm_to_vmem [thread:$0]  %s216, 2048, %s218, %s207, 128, 128, 8
        $region28: #{tpu_custom_call.1} parent=23 // pred_fallthru
          _
      $region24: #{tpu_custom_call.1} parent=5 // pred_fallthru
        _
      %p224 = scmp.le.s32.totalorder 1, %s22
      %p225 = scmp.lt.s32.totalorder %s22, 3
      %p226 = pnand %p224, %p225
      %p227 = pneg %p226
      // Predicated region
      $region29: #{tpu_custom_call.1} parent=5 // pred_check
        _
      $region30: #{tpu_custom_call.1} parent=5 // pred_check_branch
        %229 = sbr.rel (%p226) target = $region32
      $region31: #{tpu_custom_call.1} parent=5 // pred_region
        %s230 = ssub.s32 %s22, 1
        %s231 = sand.u32 %s35, 1
        %s232 = scalar_lea.sflag [#allocation3], %s231
        %s233 = sand.u32 %s35, 1
        %s234 = smul.addr %s233, 128
        %s235 = scalar_lea.vmem [#allocation2], %s234
        // Predicated region
        $region33: #{tpu_custom_call.1} parent=31 // pred_check
          %p236 = pneg %p48
        $region34: #{tpu_custom_call.1} parent=31 // pred_check_branch
          %238 = sbr.rel (%p236) target = $region36
        $region35: #{tpu_custom_call.1} parent=31 // pred_region
          %239 = dma.done %s232, 2048
        $region36: #{tpu_custom_call.1} parent=31 // pred_fallthru
          _
        // Predicated region
        $region37: #{tpu_custom_call.1} parent=31 // pred_check
          %p240 = pneg %p69
        $region38: #{tpu_custom_call.1} parent=31 // pred_check_branch
          %242 = sbr.rel (%p240) target = $region40
        $region39: #{tpu_custom_call.1} parent=31 // pred_region
          %243 = dma.done [#allocation6], 3072
        $region40: #{tpu_custom_call.1} parent=31 // pred_fallthru
          _
        %s244 = sand.u32 %s35, 1
        %s245 = scalar_lea.sflag [#allocation3], %s244
        %s246 = sand.u32 %s35, 1
        %s247 = smul.addr %s246, 128
        %s248 = scalar_lea.vmem [#allocation2], %s247
        %p249 = pneg %p48
        %p250 = pneg %p45
        %p251 = pneg %p69
        %p252 = pneg %p66
        %p253 = pneg %p90
        %p254 = pneg %p87
        %p255 = pneg %p116
        %p256 = pneg %p113
        %s257 = sand.u32 %s103, 1
        %s258 = scalar_lea.sflag [#allocation4], %s257
        %s259 = sand.u32 %s103, 1
        %s260 = smul.addr %s259, 64
        %s261 = scalar_lea.vmem [#allocation7], %s260
        %p262 = pneg %p142
        %p263 = pneg %p139
        %s264 = sand.u32 %s27, 1
        %s265 = scalar_lea.sflag [#allocation9], %s264
        %s266 = sand.u32 %s129, 1
        %s267 = smul.addr %s266, 64
        %s268 = scalar_lea.vmem [#allocation8], %s267
        %p269 = pneg %p168
        %p270 = pneg %p165
        %s271 = sand.u32 %s27, 1
        %s272 = scalar_lea.sflag [#allocation9], %s271
        %s273 = sand.u32 %s155, 1
        %s274 = smul.addr %s273, 64
        %s275 = scalar_lea.vmem [#allocation10], %s274
        %s276 = smul.u32 16, %s27
        %s277 = smul.u32 16, %s27
        %s278 = smul.u32 16, %s27
        %s279 = smul.u32 16, %s27
        %v281 = vld [vmem:[%s235] sm:$0xff]
        %v282 = vld [vmem:[%s235 + $0x8] sm:$0xff]
        %v283 = vld [vmem:[%s235 + $0x10] sm:$0xff]
        %v284 = vld [vmem:[%s235 + $0x18] sm:$0xff]
        %v285 = vld [vmem:[%s235 + $0x20] sm:$0xff]
        %v286 = vld [vmem:[%s235 + $0x28] sm:$0xff]
        %v287 = vld [vmem:[%s235 + $0x30] sm:$0xff]
        %v288 = vld [vmem:[%s235 + $0x38] sm:$0xff]
        %v289 = vld [vmem:[%s235 + $0x40] sm:$0xff]
        %v290 = vld [vmem:[%s235 + $0x48] sm:$0xff]
        %v291 = vld [vmem:[%s235 + $0x50] sm:$0xff]
        %v292 = vld [vmem:[%s235 + $0x58] sm:$0xff]
        %v293 = vld [vmem:[%s235 + $0x60] sm:$0xff]
        %v294 = vld [vmem:[%s235 + $0x68] sm:$0xff]
        %v295 = vld [vmem:[%s235 + $0x70] sm:$0xff]
        %v296 = vld [vmem:[%s235 + $0x78] sm:$0xff]
        %v297 = vpack.c.bf16 %v282, %v281
        %v298 = vpack.c.bf16 %v284, %v283
        %v299 = vpack.c.bf16 %v286, %v285
        %v300 = vpack.c.bf16 %v288, %v287
        %v301 = vpack.c.bf16 %v290, %v289
        %v302 = vpack.c.bf16 %v292, %v291
        %v303 = vpack.c.bf16 %v294, %v293
        %v304 = vpack.c.bf16 %v296, %v295
        %v305 = vld [vmem:[#allocation5] sm:$0xff]
        %v306 = vld [vmem:[#allocation5 + $0x8] sm:$0xf]
        %v307 = vld [vmem:[#allocation5 + $0xc] sm:$0xff]
        %v308 = vld [vmem:[#allocation5 + $0x14] sm:$0xf]
        %v309 = vld [vmem:[#allocation5 + $0x18] sm:$0xff]
        %v310 = vld [vmem:[#allocation5 + $0x20] sm:$0xf]
        %v311 = vld [vmem:[#allocation5 + $0x24] sm:$0xff]
        %v312 = vld [vmem:[#allocation5 + $0x2c] sm:$0xf]
        %v313 = vld [vmem:[#allocation5 + $0x30] sm:$0xff]
        %v314 = vld [vmem:[#allocation5 + $0x38] sm:$0xf]
        %v315 = vld [vmem:[#allocation5 + $0x3c] sm:$0xff]
        %v316 = vld [vmem:[#allocation5 + $0x44] sm:$0xf]
        %v317 = vld [vmem:[#allocation5 + $0x48] sm:$0xff]
        %v318 = vld [vmem:[#allocation5 + $0x50] sm:$0xf]
        %v319 = vld [vmem:[#allocation5 + $0x54] sm:$0xff]
        %v320 = vld [vmem:[#allocation5 + $0x5c] sm:$0xf]
        %v321 = vld [vmem:[#allocation5 + $0x60] sm:$0xff]
        %v322 = vld [vmem:[#allocation5 + $0x68] sm:$0xf]
        %v323 = vld [vmem:[#allocation5 + $0x6c] sm:$0xff]
        %v324 = vld [vmem:[#allocation5 + $0x74] sm:$0xf]
        %v325 = vld [vmem:[#allocation5 + $0x78] sm:$0xff]
        %v326 = vld [vmem:[#allocation5 + $0x80] sm:$0xf]
        %v327 = vld [vmem:[#allocation5 + $0x84] sm:$0xff]
        %v328 = vld [vmem:[#allocation5 + $0x8c] sm:$0xf]
        %v329 = vld [vmem:[#allocation5 + $0x90] sm:$0xff]
        %v330 = vld [vmem:[#allocation5 + $0x98] sm:$0xf]
        %v331 = vld [vmem:[#allocation5 + $0x9c] sm:$0xff]
        %v332 = vld [vmem:[#allocation5 + $0xa4] sm:$0xf]
        %v333 = vld [vmem:[#allocation5 + $0xa8] sm:$0xff]
        %v334 = vld [vmem:[#allocation5 + $0xb0] sm:$0xf]
        %v335 = vld [vmem:[#allocation5 + $0xb4] sm:$0xff]
        %v336 = vld [vmem:[#allocation5 + $0xbc] sm:$0xf]
        %v337 = vld [vmem:[%s2] sm:$0x7]
        %v339 = vlaneseq
        %v340 = vshrl.u32 %v339, 7
        %v341 = vsub.s32 0, %v340
        %v342 = vrot.slane %v337, %v341
        %v343 = vlaneseq
        %v344 = vshrl.u32 %v343, 7
        %v345 = vsub.s32 1, %v344
        %v346 = vrot.slane %v337, %v345
        %v347 = vlaneseq
        %v348 = vshrl.u32 %v347, 7
        %v349 = vsub.s32 2, %v348
        %v350 = vrot.slane %v337, %v349
        %v386 = vunpack.c.l.b16 %v305
        %v387 = vunpack.c.h.b16 %v305
        %v388 = vunpack.c.l.b16 %v306
        %v389 = vunpack.c.l.b16 %v307
        %v390 = vunpack.c.h.b16 %v307
        %v391 = vunpack.c.l.b16 %v308
        %v392 = vunpack.c.l.b16 %v309
        %v393 = vunpack.c.h.b16 %v309
        %v394 = vunpack.c.l.b16 %v310
        %v395 = vunpack.c.l.b16 %v311
        %v396 = vunpack.c.h.b16 %v311
        %v397 = vunpack.c.l.b16 %v312
        %v398 = vunpack.c.l.b16 %v313
        %v399 = vunpack.c.h.b16 %v313
        %v400 = vunpack.c.l.b16 %v314
        %v401 = vunpack.c.l.b16 %v315
        %v402 = vunpack.c.h.b16 %v315
        %v403 = vunpack.c.l.b16 %v316
        %v404 = vunpack.c.l.b16 %v317
        %v405 = vunpack.c.h.b16 %v317
        %v406 = vunpack.c.l.b16 %v318
        %v407 = vunpack.c.l.b16 %v319
        %v408 = vunpack.c.h.b16 %v319
        %v409 = vunpack.c.l.b16 %v320
        %v410 = vunpack.c.l.b16 %v321
        %v411 = vunpack.c.h.b16 %v321
        %v412 = vunpack.c.l.b16 %v322
        %v413 = vunpack.c.l.b16 %v323
        %v414 = vunpack.c.h.b16 %v323
        %v415 = vunpack.c.l.b16 %v324
        %v416 = vunpack.c.l.b16 %v325
        %v417 = vunpack.c.h.b16 %v325
        %v418 = vunpack.c.l.b16 %v326
        %v419 = vunpack.c.l.b16 %v327
        %v420 = vunpack.c.h.b16 %v327
        %v421 = vunpack.c.l.b16 %v328
        %v422 = vunpack.c.l.b16 %v329
        %v423 = vunpack.c.h.b16 %v329
        %v424 = vunpack.c.l.b16 %v330
        %v425 = vunpack.c.l.b16 %v331
        %v426 = vunpack.c.h.b16 %v331
        %v427 = vunpack.c.l.b16 %v332
        %v428 = vunpack.c.l.b16 %v333
        %v429 = vunpack.c.h.b16 %v333
        %v430 = vunpack.c.l.b16 %v334
        %v431 = vunpack.c.l.b16 %v335
        %v432 = vunpack.c.h.b16 %v335
        %v433 = vunpack.c.l.b16 %v336
        %v434 = vpack.c.b16 %v389, %v386
        %v435 = vpack.c.b16 %v390, %v387
        %v436 = vpack.c.b16 %v391, %v388
        %v437 = vpack.c.b16 %v395, %v392
        %v438 = vpack.c.b16 %v396, %v393
        %v439 = vpack.c.b16 %v397, %v394
        %v440 = vpack.c.b16 %v401, %v398
        %v441 = vpack.c.b16 %v402, %v399
        %v442 = vpack.c.b16 %v403, %v400
        %v443 = vpack.c.b16 %v407, %v404
        %v444 = vpack.c.b16 %v408, %v405
        %v445 = vpack.c.b16 %v409, %v406
        %v446 = vpack.c.b16 %v413, %v410
        %v447 = vpack.c.b16 %v414, %v411
        %v448 = vpack.c.b16 %v415, %v412
        %v449 = vpack.c.b16 %v419, %v416
        %v450 = vpack.c.b16 %v420, %v417
        %v451 = vpack.c.b16 %v421, %v418
        %v452 = vpack.c.b16 %v425, %v422
        %v453 = vpack.c.b16 %v426, %v423
        %v454 = vpack.c.b16 %v427, %v424
        %v455 = vpack.c.b16 %v431, %v428
        %v456 = vpack.c.b16 %v432, %v429
        %v457 = vpack.c.b16 %v433, %v430
        %482 = vmatprep.subr.bf16.mxu0 %v456
        %483 = vmatpush1.bf16.msra.mxu0 %v455
        %484 = vmatprep.subr.bf16.mxu0 %v453
        %485 = vmatpush1.bf16.msra.mxu0 %v452
        %486 = vmatprep.subr.bf16.mxu0 %v450
        %487 = vmatpush1.bf16.msra.mxu0 %v449
        %488 = vmatprep.subr.bf16.mxu0 %v447
        %489 = vmatpush1.bf16.msra.mxu0 %v446
        %490 = vmatprep.subr.bf16.mxu0 %v444
        %491 = vmatpush1.bf16.msra.mxu0 %v443
        %492 = vmatprep.subr.bf16.mxu0 %v441
        %493 = vmatpush1.bf16.msra.mxu0 %v440
        %494 = vmatprep.subr.bf16.mxu0 %v438
        %495 = vmatpush1.bf16.msra.mxu0 %v437
        %496 = vmatprep.subr.bf16.mxu0 %v435
        %497 = vmatpush1.bf16.msra.mxu0 %v434
        %498 = vmatprep.subr.bf16.mxu0 0
        %499 = vmatpush2.bf16.msra.mxu0 0
        %500 = vmatprep.subr.bf16.mxu0 0
        %501 = vmatpush2.bf16.msra.mxu0 0
        %502 = vmatprep.subr.bf16.mxu0 0
        %503 = vmatpush2.bf16.msra.mxu0 0
        %504 = vmatprep.subr.bf16.mxu0 0
        %505 = vmatpush2.bf16.msra.mxu0 0
        %506 = vmatprep.subr.bf16.mxu0 0
        %507 = vmatpush2.bf16.msra.mxu0 0
        %508 = vmatprep.subr.bf16.mxu0 0
        %509 = vmatpush2.bf16.msra.mxu0 0
        %510 = vmatprep.subr.bf16.mxu0 0
        %511 = vmatpush2.bf16.msra.mxu0 0
        %512 = vmatprep.subr.bf16.mxu0 0
        %513 = vmatpush2.bf16.msra.mxu0 0
        %514 = vmatprep.mubr.bf16.mxu0 0
        %515 = vmatmul.mubr.bf16.gmra.mxu0 %v297
        %v516 = vpop.f32.mrf.mxu0
        %v517 = vadd.f32 %v342, %v516
        %v518 = vpop.f32.mrf.mxu0
        %v519 = vadd.f32 %v346, %v518
        %v520 = vpop.f32.mrf.mxu0
        %v521 = vadd.f32 %v342, %v520
        %v522 = vpop.f32.mrf.mxu0
        %v523 = vadd.f32 %v346, %v522
        %524 = vmatprep.mubr.bf16.mxu0 0
        %525 = vmatmul.mubr.bf16.gmra.mxu0 %v298
        %v526 = vpop.f32.mrf.mxu0
        %v527 = vadd.f32 %v342, %v526
        %v528 = vpop.f32.mrf.mxu0
        %v529 = vadd.f32 %v346, %v528
        %v530 = vpop.f32.mrf.mxu0
        %v531 = vadd.f32 %v342, %v530
        %v532 = vpop.f32.mrf.mxu0
        %v533 = vadd.f32 %v346, %v532
        %534 = vmatprep.mubr.bf16.mxu0 0
        %535 = vmatmul.mubr.bf16.gmra.mxu0 %v299
        %v536 = vpop.f32.mrf.mxu0
        %v537 = vadd.f32 %v342, %v536
        %v538 = vpop.f32.mrf.mxu0
        %v539 = vadd.f32 %v346, %v538
        %v540 = vpop.f32.mrf.mxu0
        %v541 = vadd.f32 %v342, %v540
        %v542 = vpop.f32.mrf.mxu0
        %v543 = vadd.f32 %v346, %v542
        %544 = vmatprep.mubr.bf16.mxu0 0
        %545 = vmatmul.mubr.bf16.gmra.mxu0 %v300
        %v546 = vpop.f32.mrf.mxu0
        %v547 = vadd.f32 %v342, %v546
        %v548 = vpop.f32.mrf.mxu0
        %v549 = vadd.f32 %v346, %v548
        %v550 = vpop.f32.mrf.mxu0
        %v551 = vadd.f32 %v342, %v550
        %v552 = vpop.f32.mrf.mxu0
        %v553 = vadd.f32 %v346, %v552
        %554 = vmatprep.mubr.bf16.mxu0 0
        %555 = vmatmul.mubr.bf16.gmra.mxu0 %v301
        %v556 = vpop.f32.mrf.mxu0
        %v557 = vadd.f32 %v342, %v556
        %v558 = vpop.f32.mrf.mxu0
        %v559 = vadd.f32 %v346, %v558
        %v560 = vpop.f32.mrf.mxu0
        %v561 = vadd.f32 %v342, %v560
        %v562 = vpop.f32.mrf.mxu0
        %v563 = vadd.f32 %v346, %v562
        %564 = vmatprep.mubr.bf16.mxu0 0
        %565 = vmatmul.mubr.bf16.gmra.mxu0 %v302
        %v566 = vpop.f32.mrf.mxu0
        %v567 = vadd.f32 %v342, %v566
        %v568 = vpop.f32.mrf.mxu0
        %v569 = vadd.f32 %v346, %v568
        %v570 = vpop.f32.mrf.mxu0
        %v571 = vadd.f32 %v342, %v570
        %v572 = vpop.f32.mrf.mxu0
        %v573 = vadd.f32 %v346, %v572
        %574 = vmatprep.mubr.bf16.mxu0 0
        %575 = vmatmul.mubr.bf16.gmra.mxu0 %v303
        %v576 = vpop.f32.mrf.mxu0
        %v577 = vadd.f32 %v342, %v576
        %v578 = vpop.f32.mrf.mxu0
        %v579 = vadd.f32 %v346, %v578
        %v580 = vpop.f32.mrf.mxu0
        %v581 = vadd.f32 %v342, %v580
        %v582 = vpop.f32.mrf.mxu0
        %v583 = vadd.f32 %v346, %v582
        %584 = vmatprep.mubr.bf16.mxu0 0
        %585 = vmatmul.mubr.bf16.gmra.mxu0 %v304
        %v586 = vpop.f32.mrf.mxu0
        %v587 = vadd.f32 %v342, %v586
        %v588 = vpop.f32.mrf.mxu0
        %v589 = vadd.f32 %v346, %v588
        %v590 = vpop.f32.mrf.mxu0
        %v591 = vadd.f32 %v342, %v590
        %v592 = vpop.f32.mrf.mxu0
        %v593 = vadd.f32 %v346, %v592
        %594 = vdwg.mxu0
        %595 = vmatprep.subr.bf16.mxu0 0
        %596 = vmatpush1.bf16.msra.mxu0 %v457
        %597 = vmatprep.subr.bf16.mxu0 0
        %598 = vmatpush1.bf16.msra.mxu0 %v454
        %599 = vmatprep.subr.bf16.mxu0 0
        %600 = vmatpush1.bf16.msra.mxu0 %v451
        %601 = vmatprep.subr.bf16.mxu0 0
        %602 = vmatpush1.bf16.msra.mxu0 %v448
        %603 = vmatprep.subr.bf16.mxu0 0
        %604 = vmatpush1.bf16.msra.mxu0 %v445
        %605 = vmatprep.subr.bf16.mxu0 0
        %606 = vmatpush1.bf16.msra.mxu0 %v442
        %607 = vmatprep.subr.bf16.mxu0 0
        %608 = vmatpush1.bf16.msra.mxu0 %v439
        %609 = vmatprep.subr.bf16.mxu0 0
        %610 = vmatpush1.bf16.msra.mxu0 %v436
        %611 = vmatprep.subr.bf16.mxu0 0
        %612 = vmatpush2.bf16.msra.mxu0 0
        %613 = vmatprep.subr.bf16.mxu0 0
        %614 = vmatpush2.bf16.msra.mxu0 0
        %615 = vmatprep.subr.bf16.mxu0 0
        %616 = vmatpush2.bf16.msra.mxu0 0
        %617 = vmatprep.subr.bf16.mxu0 0
        %618 = vmatpush2.bf16.msra.mxu0 0
        %619 = vmatprep.subr.bf16.mxu0 0
        %620 = vmatpush2.bf16.msra.mxu0 0
        %621 = vmatprep.subr.bf16.mxu0 0
        %622 = vmatpush2.bf16.msra.mxu0 0
        %623 = vmatprep.subr.bf16.mxu0 0
        %624 = vmatpush2.bf16.msra.mxu0 0
        %625 = vmatprep.subr.bf16.mxu0 0
        %626 = vmatpush2.bf16.msra.mxu0 0
        %627 = vmatprep.mubr.bf16.mxu0 0
        %628 = vmatmul.mubr.bf16.gmra.mxu0 %v297
        %v629 = vpop.f32.mrf.mxu0
        %v630 = vadd.f32 %v350, %v629
        %v631 = vpop.f32.mrf.mxu0
        %v632 = vpop.f32.mrf.mxu0
        %v633 = vadd.f32 %v350, %v632
        %v634 = vpop.f32.mrf.mxu0
        %635 = vmatprep.mubr.bf16.mxu0 0
        %636 = vmatmul.mubr.bf16.gmra.mxu0 %v298
        %v637 = vpop.f32.mrf.mxu0
        %v638 = vadd.f32 %v350, %v637
        %v639 = vpop.f32.mrf.mxu0
        %v640 = vpop.f32.mrf.mxu0
        %v641 = vadd.f32 %v350, %v640
        %v642 = vpop.f32.mrf.mxu0
        %643 = vmatprep.mubr.bf16.mxu0 0
        %644 = vmatmul.mubr.bf16.gmra.mxu0 %v299
        %v645 = vpop.f32.mrf.mxu0
        %v646 = vadd.f32 %v350, %v645
        %v647 = vpop.f32.mrf.mxu0
        %v648 = vpop.f32.mrf.mxu0
        %v649 = vadd.f32 %v350, %v648
        %v650 = vpop.f32.mrf.mxu0
        %651 = vmatprep.mubr.bf16.mxu0 0
        %652 = vmatmul.mubr.bf16.gmra.mxu0 %v300
        %v653 = vpop.f32.mrf.mxu0
        %v654 = vadd.f32 %v350, %v653
        %v655 = vpop.f32.mrf.mxu0
        %v656 = vpop.f32.mrf.mxu0
        %v657 = vadd.f32 %v350, %v656
        %v658 = vpop.f32.mrf.mxu0
        %659 = vmatprep.mubr.bf16.mxu0 0
        %660 = vmatmul.mubr.bf16.gmra.mxu0 %v301
        %v661 = vpop.f32.mrf.mxu0
        %v662 = vadd.f32 %v350, %v661
        %v663 = vpop.f32.mrf.mxu0
        %v664 = vpop.f32.mrf.mxu0
        %v665 = vadd.f32 %v350, %v664
        %v666 = vpop.f32.mrf.mxu0
        %667 = vmatprep.mubr.bf16.mxu0 0
        %668 = vmatmul.mubr.bf16.gmra.mxu0 %v302
        %v669 = vpop.f32.mrf.mxu0
        %v670 = vadd.f32 %v350, %v669
        %v671 = vpop.f32.mrf.mxu0
        %v672 = vpop.f32.mrf.mxu0
        %v673 = vadd.f32 %v350, %v672
        %v674 = vpop.f32.mrf.mxu0
        %675 = vmatprep.mubr.bf16.mxu0 0
        %676 = vmatmul.mubr.bf16.gmra.mxu0 %v303
        %v677 = vpop.f32.mrf.mxu0
        %v678 = vadd.f32 %v350, %v677
        %v679 = vpop.f32.mrf.mxu0
        %v680 = vpop.f32.mrf.mxu0
        %v681 = vadd.f32 %v350, %v680
        %v682 = vpop.f32.mrf.mxu0
        %683 = vmatprep.mubr.bf16.mxu0 0
        %684 = vmatmul.mubr.bf16.gmra.mxu0 %v304
        %v685 = vpop.f32.mrf.mxu0
        %v686 = vadd.f32 %v350, %v685
        %v687 = vpop.f32.mrf.mxu0
        %v688 = vpop.f32.mrf.mxu0
        %v689 = vadd.f32 %v350, %v688
        %v690 = vpop.f32.mrf.mxu0
        %691 = vdwg.mxu0
        %v692 = vmul.f32 %v517, 0.17677669
        %v693 = vmul.f32 %v521, 0.17677669
        %v694 = vmul.f32 %v527, 0.17677669
        %v695 = vmul.f32 %v531, 0.17677669
        %v696 = vmul.f32 %v537, 0.17677669
        %v697 = vmul.f32 %v541, 0.17677669
        %v698 = vmul.f32 %v547, 0.17677669
        %v699 = vmul.f32 %v551, 0.17677669
        %v700 = vmul.f32 %v557, 0.17677669
        %v701 = vmul.f32 %v561, 0.17677669
        %v702 = vmul.f32 %v567, 0.17677669
        %v703 = vmul.f32 %v571, 0.17677669
        %v704 = vmul.f32 %v577, 0.17677669
        %v705 = vmul.f32 %v581, 0.17677669
        %v706 = vmul.f32 %v587, 0.17677669
        %v707 = vmul.f32 %v591, 0.17677669
        %v708 = vpack.c.bf16 %v693, %v692
        %v709 = vpack.c.bf16 %v695, %v694
        %v710 = vpack.c.bf16 %v697, %v696
        %v711 = vpack.c.bf16 %v699, %v698
        %v712 = vpack.c.bf16 %v701, %v700
        %v713 = vpack.c.bf16 %v703, %v702
        %v714 = vpack.c.bf16 %v705, %v704
        %v715 = vpack.c.bf16 %v707, %v706
        %v724 = vunpack.c.l.b16 %v708
        %v725 = vunpack.c.h.b16 %v708
        %v726 = vunpack.c.l.b16 %v709
        %v727 = vunpack.c.h.b16 %v709
        %v728 = vunpack.c.l.b16 %v710
        %v729 = vunpack.c.h.b16 %v710
        %v730 = vunpack.c.l.b16 %v711
        %v731 = vunpack.c.h.b16 %v711
        %v732 = vunpack.c.l.b16 %v712
        %v733 = vunpack.c.h.b16 %v712
        %v734 = vunpack.c.l.b16 %v713
        %v735 = vunpack.c.h.b16 %v713
        %v736 = vunpack.c.l.b16 %v714
        %v737 = vunpack.c.h.b16 %v714
        %v738 = vunpack.c.l.b16 %v715
        %v739 = vunpack.c.h.b16 %v715
        %v740 = vpack.c.b16 %v724, %v724
        %v741 = vpack.c.b16 %v725, %v725
        %v742 = vpack.c.b16 %v726, %v726
        %v743 = vpack.c.b16 %v727, %v727
        %v744 = vpack.c.b16 %v728, %v728
        %v745 = vpack.c.b16 %v729, %v729
        %v746 = vpack.c.b16 %v730, %v730
        %v747 = vpack.c.b16 %v731, %v731
        %v748 = vpack.c.b16 %v732, %v732
        %v749 = vpack.c.b16 %v733, %v733
        %v750 = vpack.c.b16 %v734, %v734
        %v751 = vpack.c.b16 %v735, %v735
        %v752 = vpack.c.b16 %v736, %v736
        %v753 = vpack.c.b16 %v737, %v737
        %v754 = vpack.c.b16 %v738, %v738
        %v755 = vpack.c.b16 %v739, %v739
        %772 = vst [vmem:[%s261] sm:$0xf] %v740
        %773 = vst [vmem:[%s261 + $0x4] sm:$0xf] %v741
        %774 = vst [vmem:[%s261 + $0x8] sm:$0xf] %v742
        %775 = vst [vmem:[%s261 + $0xc] sm:$0xf] %v743
        %776 = vst [vmem:[%s261 + $0x10] sm:$0xf] %v744
        %777 = vst [vmem:[%s261 + $0x14] sm:$0xf] %v745
        %778 = vst [vmem:[%s261 + $0x18] sm:$0xf] %v746
        %779 = vst [vmem:[%s261 + $0x1c] sm:$0xf] %v747
        %780 = vst [vmem:[%s261 + $0x20] sm:$0xf] %v748
        %781 = vst [vmem:[%s261 + $0x24] sm:$0xf] %v749
        %782 = vst [vmem:[%s261 + $0x28] sm:$0xf] %v750
        %783 = vst [vmem:[%s261 + $0x2c] sm:$0xf] %v751
        %784 = vst [vmem:[%s261 + $0x30] sm:$0xf] %v752
        %785 = vst [vmem:[%s261 + $0x34] sm:$0xf] %v753
        %786 = vst [vmem:[%s261 + $0x38] sm:$0xf] %v754
        %787 = vst [vmem:[%s261 + $0x3c] sm:$0xf] %v755
        %v788 = vpack.c.bf16 %v523, %v519
        %v789 = vpack.c.bf16 %v533, %v529
        %v790 = vpack.c.bf16 %v543, %v539
        %v791 = vpack.c.bf16 %v553, %v549
        %v792 = vpack.c.bf16 %v563, %v559
        %v793 = vpack.c.bf16 %v573, %v569
        %v794 = vpack.c.bf16 %v583, %v579
        %v795 = vpack.c.bf16 %v593, %v589
        %v804 = vunpack.c.l.b16 %v788
        %v805 = vunpack.c.h.b16 %v788
        %v806 = vunpack.c.l.b16 %v789
        %v807 = vunpack.c.h.b16 %v789
        %v808 = vunpack.c.l.b16 %v790
        %v809 = vunpack.c.h.b16 %v790
        %v810 = vunpack.c.l.b16 %v791
        %v811 = vunpack.c.h.b16 %v791
        %v812 = vunpack.c.l.b16 %v792
        %v813 = vunpack.c.h.b16 %v792
        %v814 = vunpack.c.l.b16 %v793
        %v815 = vunpack.c.h.b16 %v793
        %v816 = vunpack.c.l.b16 %v794
        %v817 = vunpack.c.h.b16 %v794
        %v818 = vunpack.c.l.b16 %v795
        %v819 = vunpack.c.h.b16 %v795
        %v820 = vpack.c.b16 %v804, %v804
        %v821 = vpack.c.b16 %v805, %v805
        %v822 = vpack.c.b16 %v806, %v806
        %v823 = vpack.c.b16 %v807, %v807
        %v824 = vpack.c.b16 %v808, %v808
        %v825 = vpack.c.b16 %v809, %v809
        %v826 = vpack.c.b16 %v810, %v810
        %v827 = vpack.c.b16 %v811, %v811
        %v828 = vpack.c.b16 %v812, %v812
        %v829 = vpack.c.b16 %v813, %v813
        %v830 = vpack.c.b16 %v814, %v814
        %v831 = vpack.c.b16 %v815, %v815
        %v832 = vpack.c.b16 %v816, %v816
        %v833 = vpack.c.b16 %v817, %v817
        %v834 = vpack.c.b16 %v818, %v818
        %v835 = vpack.c.b16 %v819, %v819
        %852 = vst [vmem:[%s268] sm:$0xf] %v820
        %853 = vst [vmem:[%s268 + $0x4] sm:$0xf] %v821
        %854 = vst [vmem:[%s268 + $0x8] sm:$0xf] %v822
        %855 = vst [vmem:[%s268 + $0xc] sm:$0xf] %v823
        %856 = vst [vmem:[%s268 + $0x10] sm:$0xf] %v824
        %857 = vst [vmem:[%s268 + $0x14] sm:$0xf] %v825
        %858 = vst [vmem:[%s268 + $0x18] sm:$0xf] %v826
        %859 = vst [vmem:[%s268 + $0x1c] sm:$0xf] %v827
        %860 = vst [vmem:[%s268 + $0x20] sm:$0xf] %v828
        %861 = vst [vmem:[%s268 + $0x24] sm:$0xf] %v829
        %862 = vst [vmem:[%s268 + $0x28] sm:$0xf] %v830
        %863 = vst [vmem:[%s268 + $0x2c] sm:$0xf] %v831
        %864 = vst [vmem:[%s268 + $0x30] sm:$0xf] %v832
        %865 = vst [vmem:[%s268 + $0x34] sm:$0xf] %v833
        %866 = vst [vmem:[%s268 + $0x38] sm:$0xf] %v834
        %867 = vst [vmem:[%s268 + $0x3c] sm:$0xf] %v835
        %v868 = vpack.c.bf16 %v633, %v630
        %v869 = vpack.c.bf16 %v641, %v638
        %v870 = vpack.c.bf16 %v649, %v646
        %v871 = vpack.c.bf16 %v657, %v654
        %v872 = vpack.c.bf16 %v665, %v662
        %v873 = vpack.c.bf16 %v673, %v670
        %v874 = vpack.c.bf16 %v681, %v678
        %v875 = vpack.c.bf16 %v689, %v686
        %v884 = vunpack.c.l.b16 %v868
        %v885 = vunpack.c.h.b16 %v868
        %v886 = vunpack.c.l.b16 %v869
        %v887 = vunpack.c.h.b16 %v869
        %v888 = vunpack.c.l.b16 %v870
        %v889 = vunpack.c.h.b16 %v870
        %v890 = vunpack.c.l.b16 %v871
        %v891 = vunpack.c.h.b16 %v871
        %v892 = vunpack.c.l.b16 %v872
        %v893 = vunpack.c.h.b16 %v872
        %v894 = vunpack.c.l.b16 %v873
        %v895 = vunpack.c.h.b16 %v873
        %v896 = vunpack.c.l.b16 %v874
        %v897 = vunpack.c.h.b16 %v874
        %v898 = vunpack.c.l.b16 %v875
        %v899 = vunpack.c.h.b16 %v875
        %v900 = vpack.c.b16 %v884, %v884
        %v901 = vpack.c.b16 %v885, %v885
        %v902 = vpack.c.b16 %v886, %v886
        %v903 = vpack.c.b16 %v887, %v887
        %v904 = vpack.c.b16 %v888, %v888
        %v905 = vpack.c.b16 %v889, %v889
        %v906 = vpack.c.b16 %v890, %v890
        %v907 = vpack.c.b16 %v891, %v891
        %v908 = vpack.c.b16 %v892, %v892
        %v909 = vpack.c.b16 %v893, %v893
        %v910 = vpack.c.b16 %v894, %v894
        %v911 = vpack.c.b16 %v895, %v895
        %v912 = vpack.c.b16 %v896, %v896
        %v913 = vpack.c.b16 %v897, %v897
        %v914 = vpack.c.b16 %v898, %v898
        %v915 = vpack.c.b16 %v899, %v899
        %932 = vst [vmem:[%s275] sm:$0xf] %v900
        %933 = vst [vmem:[%s275 + $0x4] sm:$0xf] %v901
        %934 = vst [vmem:[%s275 + $0x8] sm:$0xf] %v902
        %935 = vst [vmem:[%s275 + $0xc] sm:$0xf] %v903
        %936 = vst [vmem:[%s275 + $0x10] sm:$0xf] %v904
        %937 = vst [vmem:[%s275 + $0x14] sm:$0xf] %v905
        %938 = vst [vmem:[%s275 + $0x18] sm:$0xf] %v906
        %939 = vst [vmem:[%s275 + $0x1c] sm:$0xf] %v907
        %940 = vst [vmem:[%s275 + $0x20] sm:$0xf] %v908
        %941 = vst [vmem:[%s275 + $0x24] sm:$0xf] %v909
        %942 = vst [vmem:[%s275 + $0x28] sm:$0xf] %v910
        %943 = vst [vmem:[%s275 + $0x2c] sm:$0xf] %v911
        %944 = vst [vmem:[%s275 + $0x30] sm:$0xf] %v912
        %945 = vst [vmem:[%s275 + $0x34] sm:$0xf] %v913
        %946 = vst [vmem:[%s275 + $0x38] sm:$0xf] %v914
        %947 = vst [vmem:[%s275 + $0x3c] sm:$0xf] %v915
        %s948 = sand.u32 %s103, 1
        %s949 = scalar_lea.sflag [#allocation4], %s948
        %s950 = sand.u32 %s103, 1
        %s951 = smul.addr %s950, 64
        %s952 = scalar_lea.vmem [#allocation7], %s951
        %s953 = sand.u32 %s27, 1
        %s954 = scalar_lea.sflag [#allocation9], %s953
        %s955 = sand.u32 %s129, 1
        %s956 = smul.addr %s955, 64
        %s957 = scalar_lea.vmem [#allocation8], %s956
        %s958 = sand.u32 %s27, 1
        %s959 = scalar_lea.sflag [#allocation9], %s958
        %s960 = sand.u32 %s155, 1
        %s961 = smul.addr %s960, 64
        %s962 = scalar_lea.vmem [#allocation10], %s961
        // Predicated region
        $region41: #{tpu_custom_call.1} parent=31 // pred_check
          %p963 = pneg %p113
        $region42: #{tpu_custom_call.1} parent=31 // pred_check_branch
          %965 = sbr.rel (%p963) target = $region44
        $region43: #{tpu_custom_call.1} parent=31 // pred_region
          %s966 = smul.u32 16, %s27
          %s968 = ssub.s32 1024, 1024
          %969 = vsyncadd %s949, %s968
          %s970 = smul.addr %s966, 64
          %s971 = scalar_lea.hbm %s3, %s970
          %s972 = sshll.u32 %s952, 4
          %s973 = int_to_ptr.vmem [resolvable:$true] %s972
          %978 = dma.vmem_to_hbm [thread:$0]  %s973, 1024, %s971, %s949, 64, 64, 4
        $region44: #{tpu_custom_call.1} parent=31 // pred_fallthru
          _
        // Predicated region
        $region45: #{tpu_custom_call.1} parent=31 // pred_check
          %p979 = pneg %p139
        $region46: #{tpu_custom_call.1} parent=31 // pred_check_branch
          %981 = sbr.rel (%p979) target = $region48
        $region47: #{tpu_custom_call.1} parent=31 // pred_region
          %s982 = smul.u32 16, %s27
          %s984 = ssub.s32 1024, 1024
          %985 = vsyncadd %s954, %s984
          %s986 = smul.addr %s982, 64
          %s987 = scalar_lea.hbm %s4, %s986
          %s988 = sshll.u32 %s957, 4
          %s989 = int_to_ptr.vmem [resolvable:$true] %s988
          %994 = dma.vmem_to_hbm [thread:$0]  %s989, 1024, %s987, %s954, 64, 64, 4
        $region48: #{tpu_custom_call.1} parent=31 // pred_fallthru
          _
        // Predicated region
        $region49: #{tpu_custom_call.1} parent=31 // pred_check
          %p995 = pneg %p165
        $region50: #{tpu_custom_call.1} parent=31 // pred_check_branch
          %997 = sbr.rel (%p995) target = $region52
        $region51: #{tpu_custom_call.1} parent=31 // pred_region
          %s998 = smul.u32 16, %s27
          %s1000 = ssub.s32 1024, 1024
          %1001 = vsyncadd %s959, %s1000
          %s1002 = smul.addr %s998, 64
          %s1003 = scalar_lea.hbm %s5, %s1002
          %s1004 = sshll.u32 %s962, 4
          %s1005 = int_to_ptr.vmem [resolvable:$true] %s1004
          %1010 = dma.vmem_to_hbm [thread:$0]  %s1005, 1024, %s1003, %s959, 64, 64, 4
        $region52: #{tpu_custom_call.1} parent=31 // pred_fallthru
          _
      $region32: #{tpu_custom_call.1} parent=5 // pred_fallthru
        _
      %p1011 = scmp.le.s32.totalorder 2, %s22
      // Predicated region
      $region53: #{tpu_custom_call.1} parent=5 // pred_check
        %p1012 = pneg %p1011
      $region54: #{tpu_custom_call.1} parent=5 // pred_check_branch
        %1014 = sbr.rel (%p1012) target = $region56
      $region55: #{tpu_custom_call.1} parent=5 // pred_region
        %s1015 = ssub.s32 %s22, 2
        // Predicated region
        $region57: #{tpu_custom_call.1} parent=55 // pred_check
          %p1016 = pneg %p119
        $region58: #{tpu_custom_call.1} parent=55 // pred_check_branch
          %1018 = sbr.rel (%p1016) target = $region60
        $region59: #{tpu_custom_call.1} parent=55 // pred_region
          %s1019 = sand.u32 %s104, 1
          %s1020 = scalar_lea.sflag [#allocation4], %s1019
          %s1021 = sand.u32 %s104, 1
          %s1022 = smul.addr %s1021, 64
          %s1023 = scalar_lea.vmem [#allocation7], %s1022
          %1024 = dma.done %s1020, 1024
        $region60: #{tpu_custom_call.1} parent=55 // pred_fallthru
          _
        // Predicated region
        $region61: #{tpu_custom_call.1} parent=55 // pred_check
          %p1025 = pneg %p145
        $region62: #{tpu_custom_call.1} parent=55 // pred_check_branch
          %1027 = sbr.rel (%p1025) target = $region64
        $region63: #{tpu_custom_call.1} parent=55 // pred_region
          %s1028 = sand.u32 %s28, 1
          %s1029 = scalar_lea.sflag [#allocation9], %s1028
          %s1030 = sand.u32 %s130, 1
          %s1031 = smul.addr %s1030, 64
          %s1032 = scalar_lea.vmem [#allocation8], %s1031
          %1033 = dma.done %s1029, 1024
        $region64: #{tpu_custom_call.1} parent=55 // pred_fallthru
          _
        // Predicated region
        $region65: #{tpu_custom_call.1} parent=55 // pred_check
          %p1034 = pneg %p171
        $region66: #{tpu_custom_call.1} parent=55 // pred_check_branch
          %1036 = sbr.rel (%p1034) target = $region68
        $region67: #{tpu_custom_call.1} parent=55 // pred_region
          %s1037 = sand.u32 %s28, 1
          %s1038 = scalar_lea.sflag [#allocation9], %s1037
          %s1039 = sand.u32 %s156, 1
          %s1040 = smul.addr %s1039, 64
          %s1041 = scalar_lea.vmem [#allocation10], %s1040
          %1042 = dma.done %s1038, 1024
        $region68: #{tpu_custom_call.1} parent=55 // pred_fallthru
          _
      $region56: #{tpu_custom_call.1} parent=5 // pred_fallthru
        _
    $region6: #{tpu_custom_call.1} parent=1 // loop_footer
      %s26 = sadd.s32 1, %s22
    $region7: #{tpu_custom_call.1} parent=1 // loop_footer_branch
      %21 = sbr.rel target = $region3
    $region8: #{tpu_custom_call.1} parent=1 // loop_exit
      _
    %1043 = vsyncpa [#allocation3], 1
    %s1044 = scalar_lea.sflag [#allocation3], 1
    %1045 = vsyncpa %s1044, 1
    %1046 = vsyncpa [#allocation6], 1
    %1047 = vsyncpa [#allocation4], 1
    %s1048 = scalar_lea.sflag [#allocation4], 1
    %1049 = vsyncpa %s1048, 1
    %1050 = vsyncpa [#allocation9], 1
    %s1051 = scalar_lea.sflag [#allocation9], 1
    %1052 = vsyncpa %s1051, 1

</llo_original>
